<compile_context>
chip_gen: v5e
topology: v5e:2x2
jax: 0.10.0
libtpu: 0.0.40
codegen_flags: <defaults>
</compile_context>

<pallas_src>
import functools

import jax
import jax.numpy as jnp
from jax.experimental import pallas as pl
from jax.experimental.pallas import tpu as pltpu


def _round_up(x: int, m: int) -> int:
    return ((x + m - 1) // m) * m


def _vmem_capacity_bytes() -> int:
    """Physical VMEM per TensorCore; conservative 64 MiB fallback (v7x) if query fails."""
    try:
        info = pltpu.get_tpu_info()
        cap = getattr(info, "vmem_capacity_bytes", None)
        if cap:
            return int(cap)
    except Exception:
        pass
    return 64 << 20


# ----------------------------------------------------------------------------- kernels


def _head_kernel_resident(x_ref, w1_ref, b1_ref, w2_ref, b2_ref, o_ref):
    # x_ref:  (TB, input_dim)          x dtype (cast to compute dtype in-kernel)
    # w1_ref: (input_dim, inner_dim)   compute dtype (resident, single-buffered)
    # b1_ref: (1, inner_dim)           f32
    # w2_ref: (inner_dim, Npad)        compute dtype (resident, single-buffered)
    # b2_ref: (1, Npad)                f32
    # o_ref:  (TB, Npad)               output dtype
    x = x_ref[...].astype(w1_ref.dtype)
    h = jnp.dot(x, w1_ref[...], preferred_element_type=jnp.float32)
    h = jnp.tanh(h + b1_ref[...])                       # bias + tanh in f32 (VPU/EUP)
    y = jnp.dot(h.astype(w2_ref.dtype), w2_ref[...],
                preferred_element_type=jnp.float32)
    o_ref[...] = (y + b2_ref[...]).astype(o_ref.dtype)


def _head_kernel_streamed(x_ref, w1_ref, b1_ref, w2_ref, b2_ref, o_ref, acc_ref):
    # Grid = (batch tiles, inner_dim chunks); inner chunk axis is the reduction ("arbitrary").
    # x_ref:  (TB, input_dim)            constant over the chunk axis -> stays resident
    # w1_ref: (input_dim, tile_inner)    pipelined column chunk of w1
    # b1_ref: (1, tile_inner)            f32 chunk
    # w2_ref: (tile_inner, Npad)         pipelined row chunk of w2
    # b2_ref: (1, Npad)                  f32, resident
    # acc_ref:(TB, Npad)                 f32 accumulator scratch
    j = pl.program_id(1)

    @pl.when(j == 0)
    def _():
        acc_ref[...] = jnp.zeros_like(acc_ref)

    x = x_ref[...].astype(w1_ref.dtype)
    h = jnp.dot(x, w1_ref[...], preferred_element_type=jnp.float32)
    h = jnp.tanh(h + b1_ref[...])
    acc_ref[...] += jnp.dot(h.astype(w2_ref.dtype), w2_ref[...],
                            preferred_element_type=jnp.float32)

    @pl.when(j == pl.num_programs(1) - 1)
    def _():
        o_ref[...] = (acc_ref[...] + b2_ref[...]).astype(o_ref.dtype)


# ----------------------------------------------------------------------------- wrapper


def prepare_head_params(w1, b1, w2, b2, *, compute_dtype=jnp.bfloat16):
    """One-time (init-time) cast / lane-pad of the head parameters.

    w1: (input_dim, inner_dim)   pre-transposed vs nn.Linear.weight
    b1: (inner_dim,)
    w2: (inner_dim, num_classes) pre-transposed
    b2: (num_classes,)
    """
    input_dim, inner_dim = w1.shape
    num_classes = w2.shape[1]
    n_pad = _round_up(num_classes, 128)
    w1c = jnp.asarray(w1).astype(compute_dtype)
    w2c = jnp.pad(jnp.asarray(w2, jnp.float32),
                  ((0, 0), (0, n_pad - num_classes))).astype(compute_dtype)
    b1_2d = jnp.asarray(b1, jnp.float32).reshape(1, inner_dim)
    b2_2d = jnp.pad(jnp.asarray(b2, jnp.float32),
                    (0, n_pad - num_classes)).reshape(1, n_pad)
    return dict(w1=w1c, b1=b1_2d, w2=w2c, b2=b2_2d, num_classes=num_classes)


def _choose_tile_inner(inner_dim: int, target: int) -> int:
    """Largest divisor of inner_dim that is a multiple of 128 and <= target (else inner_dim)."""
    cands = [c for c in range(128, inner_dim + 1, 128)
             if inner_dim % c == 0 and c <= target]
    return max(cands) if cands else inner_dim


def classification_head(x, params, *, block_b=None, tile_inner=None,
                        force_stream=False, slice_output=True):
    """y = out_proj(tanh(dense(x)));  dropout is identity in eval mode.

    x: (B, input_dim) -> (B, num_classes)  (or padded (B_pad, n_pad) if slice_output=False)
    """
    w1, b1, w2, b2 = params["w1"], params["b1"], params["w2"], params["b2"]
    num_classes = params["num_classes"]

    B, input_dim = x.shape
    inner_dim = w1.shape[1]
    n_pad = w2.shape[1]
    out_dtype = x.dtype

    cbytes = jnp.dtype(w1.dtype).itemsize
    xbytes = jnp.dtype(x.dtype).itemsize
    obytes = jnp.dtype(out_dtype).itemsize

    vmem_cap = _vmem_capacity_bytes()
    budget = vmem_cap - (16 << 20)           # leave headroom for compiler scratch

    # ---- chip-aware batch tile ------------------------------------------------
    if block_b is None:
        block_b = 512 if cbytes == 2 else 256
        if vmem_cap <= (64 << 20) and inner_dim >= 2048:
            block_b = 256                    # v7x: f32 h intermediate pressure
        elif vmem_cap >= (96 << 20) and input_dim <= 1024 and inner_dim <= 1024:
            block_b = 1024                   # v5e/v6e: amortize per-step overhead
    block_b = min(_round_up(block_b, 8), _round_up(B, 8))
    B_pad = _round_up(B, block_b)
    n_batch_tiles = B_pad // block_b

    # ---- footprint models -----------------------------------------------------
    def resident_footprint(bb):
        return (2 * bb * input_dim * xbytes            # x tile, double-buffered
                + 2 * bb * n_pad * obytes              # out tile, double-buffered
                + input_dim * inner_dim * cbytes       # w1 (Buffered(1))
                + inner_dim * n_pad * cbytes           # w2 (Buffered(1))
                + (inner_dim + n_pad) * 4              # biases
                + bb * input_dim * cbytes              # in-kernel x cast
                + bb * inner_dim * (4 + cbytes)        # f32 h + compute-dtype copy
                + bb * n_pad * 4)                      # f32 second-matmul result

    def streamed_footprint(bb, ti):
        return (2 * bb * input_dim * xbytes
                + 2 * bb * n_pad * obytes
                + 2 * input_dim * ti * cbytes          # w1 chunk, double-buffered
                + 2 * ti * n_pad * cbytes              # w2 chunk, double-buffered
                + 2 * ti * 4 + n_pad * 4               # biases
                + bb * n_pad * 4                       # f32 accumulator scratch
                + bb * input_dim * cbytes              # in-kernel x cast
                + bb * ti * (4 + cbytes)               # f32 h chunk + copy
                + bb * n_pad * 4)

    use_stream = force_stream or (resident_footprint(block_b) > budget)

    # ---- input padding (batch only; weights were padded at prep time) ----------
    xp = x if B_pad == B else jnp.pad(x, ((0, B_pad - B), (0, 0)))

    # ---- megacore guard ---------------------------------------------------------
    weight_bytes = (input_dim * inner_dim + inner_dim * n_pad) * cbytes
    x_total_bytes = B_pad * input_dim * xbytes
    batch_sem = ("parallel"
                 if (n_batch_tiles >= 4 and x_total_bytes >= weight_bytes)
                 else "arbitrary")

    cost = pl.CostEstimate(
        flops=2 * B_pad * (input_dim * inner_dim + inner_dim * n_pad),
        transcendentals=B_pad * inner_dim,
        bytes_accessed=(B_pad * input_dim * xbytes + weight_bytes
                        + B_pad * n_pad * obytes),
    )

    resident = pl.Buffered(1)

    if not use_stream:
        footprint = resident_footprint(block_b)
        vmem_limit = int(max(min(footprint + (8 << 20), vmem_cap - (4 << 20)), 16 << 20))
        out = pl.pallas_call(
            _head_kernel_resident,
            out_shape=jax.ShapeDtypeStruct((B_pad, n_pad), out_dtype),
            grid_spec=pltpu.PrefetchScalarGridSpec(
                num_scalar_prefetch=0,
                grid=(n_batch_tiles,),
                in_specs=[
                    pl.BlockSpec((block_b, input_dim), lambda i: (i, 0)),
                    pl.BlockSpec((input_dim, inner_dim), lambda i: (0, 0),
                                 pipeline_mode=resident),
                    pl.BlockSpec((1, inner_dim), lambda i: (0, 0),
                                 pipeline_mode=resident),
                    pl.BlockSpec((inner_dim, n_pad), lambda i: (0, 0),
                                 pipeline_mode=resident),
                    pl.BlockSpec((1, n_pad), lambda i: (0, 0),
                                 pipeline_mode=resident),
                ],
                out_specs=pl.BlockSpec((block_b, n_pad), lambda i: (i, 0)),
            ),
            compiler_params=pltpu.CompilerParams(
                dimension_semantics=(batch_sem,),
                vmem_limit_bytes=vmem_limit,
            ),
            cost_estimate=cost,
        )(xp, w1, b1, w2, b2)
    else:
        # ---- streamed inner_dim path (large heads / small-VMEM chips) ----------
        if tile_inner is None:
            tile_inner = _choose_tile_inner(inner_dim, 512)
            while (streamed_footprint(block_b, tile_inner) > budget
                   and tile_inner > 128 and tile_inner % 256 == 0):
                tile_inner //= 2
        assert inner_dim % tile_inner == 0
        n_chunks = inner_dim // tile_inner
        footprint = streamed_footprint(block_b, tile_inner)
        vmem_limit = int(max(min(footprint + (8 << 20), vmem_cap - (4 << 20)), 16 << 20))

        out = pl.pallas_call(
            _head_kernel_streamed,
            out_shape=jax.ShapeDtypeStruct((B_pad, n_pad), out_dtype),
            grid_spec=pltpu.PrefetchScalarGridSpec(
                num_scalar_prefetch=0,
                grid=(n_batch_tiles, n_chunks),
                in_specs=[
                    pl.BlockSpec((block_b, input_dim), lambda i, j: (i, 0)),   # x (resident over j)
                    pl.BlockSpec((input_dim, tile_inner), lambda i, j: (0, j)),  # w1 chunk
                    pl.BlockSpec((1, tile_inner), lambda i, j: (0, j)),          # b1 chunk
                    pl.BlockSpec((tile_inner, n_pad), lambda i, j: (j, 0)),      # w2 chunk
                    pl.BlockSpec((1, n_pad), lambda i, j: (0, 0),
                                 pipeline_mode=resident),                        # b2 resident
                ],
                out_specs=pl.BlockSpec((block_b, n_pad), lambda i, j: (i, 0)),
                scratch_shapes=[pltpu.VMEM((block_b, n_pad), jnp.float32)],
            ),
            compiler_params=pltpu.CompilerParams(
                dimension_semantics=(batch_sem, "arbitrary"),
                vmem_limit_bytes=vmem_limit,
            ),
            cost_estimate=cost,
        )(xp, w1, b1, w2, b2)

    if slice_output:
        return out[:B, :num_classes]
    return out


# ----------------------------------------------------------------------------- reference


def _reference(x, w1, b1, w2, b2, compute_dtype):
    """Pure-JAX reference with matching operand precision."""
    xc = x.astype(compute_dtype)
    h = jnp.dot(xc, w1.astype(compute_dtype), preferred_element_type=jnp.float32)
    h = jnp.tanh(h + b1.astype(jnp.float32))
    y = jnp.dot(h.astype(compute_dtype), w2.astype(compute_dtype),
                preferred_element_type=jnp.float32)
    return (y + b2.astype(jnp.float32)).astype(x.dtype)


if __name__ == "__main__":
    # Small, module-consistent shapes: batch=8 tokens, input_dim=32, inner_dim=32, 8 classes.
    B, input_dim, inner_dim, num_classes = 8, 32, 32, 8

    key = jax.random.PRNGKey(0)
    k_x, k_w1, k_b1, k_w2, k_b2 = jax.random.split(key, 5)

    x = jax.random.normal(k_x, (B, input_dim), dtype=jnp.float32)
    # Deterministic "Linear"-style init (scaled normal); stored pre-transposed.
    w1 = jax.random.normal(k_w1, (input_dim, inner_dim), dtype=jnp.float32) * (1.0 / input_dim**0.5)
    b1 = jax.random.normal(k_b1, (inner_dim,), dtype=jnp.float32) * 0.01
    w2 = jax.random.normal(k_w2, (inner_dim, num_classes), dtype=jnp.float32) * (1.0 / inner_dim**0.5)
    b2 = jax.random.normal(k_b2, (num_classes,), dtype=jnp.float32) * 0.01

    # 1) f32-operand path (test-only): exact check vs f32 reference.
    params_f32 = prepare_head_params(w1, b1, w2, b2, compute_dtype=jnp.float32)
    out_f32 = jax.block_until_ready(classification_head(x, params_f32))
    ref_f32 = _reference(x, w1, b1, w2, b2, jnp.float32)
    assert out_f32.shape == (B, num_classes)
    assert jnp.allclose(out_f32, ref_f32, atol=1e-5, rtol=1e-5), "f32 path mismatch"

    # 2) bf16-operand fast path (production default): looser tolerance vs bf16-operand reference.
    params_bf16 = prepare_head_params(w1, b1, w2, b2, compute_dtype=jnp.bfloat16)
    out_bf16 = jax.block_until_ready(classification_head(x, params_bf16))
    ref_bf16 = _reference(x, w1, b1, w2, b2, jnp.bfloat16)
    assert jnp.allclose(out_bf16, ref_bf16, atol=2e-2, rtol=2e-2), "bf16 path mismatch"

    # 3) Multi-tile batch: exercises grid > 1 (pipelined x/out DMA, lane-padded stores,
    #    megacore guard) while staying small.
    B2 = 1024
    x2 = jax.random.normal(jax.random.fold_in(key, 1), (B2, input_dim), dtype=jnp.float32)
    out2 = jax.block_until_ready(classification_head(x2, params_bf16, block_b=256))
    ref2 = _reference(x2, w1, b1, w2, b2, jnp.bfloat16)
    assert out2.shape == (B2, num_classes)
    assert jnp.allclose(out2, ref2, atol=2e-2, rtol=2e-2), "tiled bf16 path mismatch"

    # 4) Streamed-inner_dim path (forced): 2-D grid, f32 accumulator, chunked w1/w2.
    B3, in3, hid3, nc3 = 64, 128, 256, 8
    kk = jax.random.fold_in(key, 2)
    k_x3, k_w13, k_b13, k_w23, k_b23 = jax.random.split(kk, 5)
    x3 = jax.random.normal(k_x3, (B3, in3), dtype=jnp.float32)
    w13 = jax.random.normal(k_w13, (in3, hid3), dtype=jnp.float32) * (1.0 / in3**0.5)
    b13 = jax.random.normal(k_b13, (hid3,), dtype=jnp.float32) * 0.01
    w23 = jax.random.normal(k_w23, (hid3, nc3), dtype=jnp.float32) * (1.0 / hid3**0.5)
    b23 = jax.random.normal(k_b23, (nc3,), dtype=jnp.float32) * 0.01
    params3 = prepare_head_params(w13, b13, w23, b23, compute_dtype=jnp.bfloat16)
    out3 = jax.block_until_ready(
        classification_head(x3, params3, force_stream=True, tile_inner=128))
    ref3 = _reference(x3, w13, b13, w23, b23, jnp.bfloat16)
    assert out3.shape == (B3, nc3)
    assert jnp.allclose(out3, ref3, atol=2e-2, rtol=2e-2), "streamed bf16 path mismatch"

    print("KERNEL_OK")
</pallas_src>

<mosaic_0001>
module attributes {stable_mosaic.version = 11 : i64} {
  func.func @_head_kernel_resident(%arg0: i32, %arg1: memref<8x32xf32, #tpu.memory_space<vmem>>, %arg2: memref<32x32xf32, #tpu.memory_space<vmem>>, %arg3: memref<1x32xf32, #tpu.memory_space<vmem>>, %arg4: memref<32x128xf32, #tpu.memory_space<vmem>>, %arg5: memref<1x128xf32, #tpu.memory_space<vmem>>, %arg6: memref<8x128xf32, #tpu.memory_space<vmem>>) attributes {dimension_semantics = [#tpu.dimension_semantics<arbitrary>], iteration_bounds = array<i64: 1>, scalar_prefetch = 0 : i64, scratch_operands = 0 : i64, tpu.core_type = #tpu.core_type<tc>, window_params = [{transform_indices = @transform_0, window_bounds = array<i64: 8, 32>}, {pipeline_mode = #tpu.pipeline_mode<synchronous>, transform_indices = @transform_1, window_bounds = array<i64: 32, 32>}, {pipeline_mode = #tpu.pipeline_mode<synchronous>, transform_indices = @transform_2, window_bounds = array<i64: 1, 32>}, {pipeline_mode = #tpu.pipeline_mode<synchronous>, transform_indices = @transform_3, window_bounds = array<i64: 32, 128>}, {pipeline_mode = #tpu.pipeline_mode<synchronous>, transform_indices = @transform_4, window_bounds = array<i64: 1, 128>}, {transform_indices = @transform_5, window_bounds = array<i64: 8, 128>}]} {
    %c0 = arith.constant 0 : index
    %c0_0 = arith.constant 0 : index
    %0 = vector.load %arg1[%c0, %c0_0] : memref<8x32xf32, #tpu.memory_space<vmem>>, vector<8x32xf32>
    %c0_1 = arith.constant 0 : index
    %c0_2 = arith.constant 0 : index
    %1 = vector.load %arg2[%c0_1, %c0_2] : memref<32x32xf32, #tpu.memory_space<vmem>>, vector<32x32xf32>
    %cst = arith.constant dense<0.000000e+00> : vector<8x32xf32>
    %2 = tpu.matmul %0, %1, %cst {dimension_numbers = #tpu.dot_dimension_numbers<[1], [0], [0], [1], [0, 0, 1, 1], [], []>} : vector<8x32xf32>, vector<32x32xf32>, vector<8x32xf32> -> vector<8x32xf32>
    %c0_3 = arith.constant 0 : index
    %c0_4 = arith.constant 0 : index
    %3 = vector.load %arg3[%c0_3, %c0_4] : memref<1x32xf32, #tpu.memory_space<vmem>>, vector<1x32xf32>
    %4 = vector.broadcast %3 : vector<1x32xf32> to vector<8x32xf32>
    %5 = arith.addf %2, %4 : vector<8x32xf32>
    %6 = math.tanh %5 : vector<8x32xf32>
    %c0_5 = arith.constant 0 : index
    %c0_6 = arith.constant 0 : index
    %7 = vector.load %arg4[%c0_5, %c0_6] : memref<32x128xf32, #tpu.memory_space<vmem>>, vector<32x128xf32>
    %cst_7 = arith.constant dense<0.000000e+00> : vector<8x128xf32>
    %8 = tpu.matmul %6, %7, %cst_7 {dimension_numbers = #tpu.dot_dimension_numbers<[1], [0], [0], [1], [0, 0, 1, 1], [], []>} : vector<8x32xf32>, vector<32x128xf32>, vector<8x128xf32> -> vector<8x128xf32>
    %c0_8 = arith.constant 0 : index
    %c0_9 = arith.constant 0 : index
    %9 = vector.load %arg5[%c0_8, %c0_9] : memref<1x128xf32, #tpu.memory_space<vmem>>, vector<1x128xf32>
    %10 = vector.broadcast %9 : vector<1x128xf32> to vector<8x128xf32>
    %11 = arith.addf %8, %10 : vector<8x128xf32>
    %c0_10 = arith.constant 0 : index
    %c0_11 = arith.constant 0 : index
    %12 = vector.load %arg6[%c0_10, %c0_11] : memref<8x128xf32, #tpu.memory_space<vmem>>, vector<8x128xf32>
    tpu.vector_store %arg6[%c0_10, %c0_11], %11 {strides = array<i32>} : memref<8x128xf32, #tpu.memory_space<vmem>>, vector<8x128xf32>,
    return
  }
  func.func @transform_0(%arg0: i32) -> (i32, i32) {
    %c0_i32 = arith.constant 0 : i32
    %c0_i32_0 = arith.constant 0 : i32
    return %arg0, %c0_i32 : i32, i32
  }
  func.func @transform_1(%arg0: i32) -> (i32, i32) {
    %c0_i32 = arith.constant 0 : i32
    %c0_i32_0 = arith.constant 0 : i32
    %c0_i32_1 = arith.constant 0 : i32
    return %c0_i32, %c0_i32_0 : i32, i32
  }
  func.func @transform_2(%arg0: i32) -> (i32, i32) {
    %c0_i32 = arith.constant 0 : i32
    %c0_i32_0 = arith.constant 0 : i32
    %c0_i32_1 = arith.constant 0 : i32
    return %c0_i32, %c0_i32_0 : i32, i32
  }
  func.func @transform_3(%arg0: i32) -> (i32, i32) {
    %c0_i32 = arith.constant 0 : i32
    %c0_i32_0 = arith.constant 0 : i32
    %c0_i32_1 = arith.constant 0 : i32
    return %c0_i32, %c0_i32_0 : i32, i32
  }
  func.func @transform_4(%arg0: i32) -> (i32, i32) {
    %c0_i32 = arith.constant 0 : i32
    %c0_i32_0 = arith.constant 0 : i32
    %c0_i32_1 = arith.constant 0 : i32
    return %c0_i32, %c0_i32_0 : i32, i32
  }
  func.func @transform_5(%arg0: i32) -> (i32, i32) {
    %c0_i32 = arith.constant 0 : i32
    %c0_i32_0 = arith.constant 0 : i32
    return %arg0, %c0_i32 : i32, i32
  }
}

</mosaic_0001>

<llo_original>
// kernel: tpu_custom_call.1
$region0: #{tpu_custom_call.1}
  #allocation0 [shape = 'u32[]', space=smem, size = 0x4, offset = 0x4, fixed_abs, tag = 'smem constant byte address 0x4 - core index']
  #allocation1 [shape = 'u32[72,128]{1,0:T(1,128)}', space=vmem, size = 0x9000, scoped, tag = 'internal scratch']
  %s0 = inlined_call_operand.hbm [shape: f32[8,32], index: 0, kind: input, shape index: {}]
  %s1 = inlined_call_operand.hbm [shape: f32[32,32], index: 1, kind: input, shape index: {}]
  %s2 = inlined_call_operand.vmem [shape: f32[1,32], index: 2, kind: input, shape index: {}]
  %s3 = inlined_call_operand.hbm [shape: f32[32,128], index: 3, kind: input, shape index: {}]
  %s4 = inlined_call_operand.vmem [shape: f32[1,128], index: 4, kind: input, shape index: {}]
  %s5 = inlined_call_operand.hbm [shape: f32[8,128], index: 5, kind: output, shape index: {}]
  %s6 = sld [smem:[#allocation0]]
  $region42: #{tpu_custom_call.1} parent=0
    _
  %s8 = ssub.s32 1, %s6
  %s9 = scalar_select 0, %s8, %s6
  $region1: #{tpu_custom_call.1} parent=0
    #allocation2 [shape = 'u8[4096]{0}', space=vmem, size = 0x1000, scoped, tag = 'input window, operand 0, single buffered']
    #allocation3 [shape = 's32[1]{0}', space=sflag, size = 0x4, scoped, tag = 'scoped memory for tpu_custom_call.1']
    #allocation4 [shape = 's32[1]{0}', space=sflag, size = 0x4, scoped, tag = 'scoped memory for tpu_custom_call.1']
    #allocation5 [shape = 'u8[16384]{0}', space=vmem, size = 0x4000, scoped, tag = 'input window, operand 1, single buffered']
    #allocation6 [shape = 's32[1]{0}', space=sflag, size = 0x4, scoped, tag = 'scoped memory for tpu_custom_call.1']
    #allocation7 [shape = 'u8[16384]{0}', space=vmem, size = 0x4000, scoped, tag = 'input window, operand 3, single buffered']
    #allocation8 [shape = 'u8[4096]{0}', space=vmem, size = 0x1000, scoped, tag = 'output window, operand 0, single buffered']
    %10 = vsyncpa [#allocation3], 0
    %11 = vsyncpa [#allocation6], 0
    %12 = vsyncpa [#allocation4], 0
    // Predicated region
    $region2: #{tpu_custom_call.1} parent=1 // pred_check
      _
    $region3: #{tpu_custom_call.1} parent=1 // pred_check_branch
      %14 = sbr.rel (0) target = $region5
    $region4: #{tpu_custom_call.1} parent=1 // pred_region
      %16 = vsyncadd [#allocation3], 0
      %s18 = sshll.u32 %s0, 4
      %s19 = int_to_ptr.hbm [resolvable:$true] %s18
      %s20 = sshll.u32 [#allocation2], 4
      %s21 = int_to_ptr.vmem [resolvable:$true] %s20
      %23 = dma.hbm_to_vmem [thread:$0]  %s19, 128, %s21, [#allocation3]
    $region5: #{tpu_custom_call.1} parent=1 // pred_fallthru
      _
    // Predicated region
    $region6: #{tpu_custom_call.1} parent=1 // pred_check
      _
    $region7: #{tpu_custom_call.1} parent=1 // pred_check_branch
      %25 = sbr.rel (0) target = $region9
    $region8: #{tpu_custom_call.1} parent=1 // pred_region
      %27 = vsyncadd [#allocation6], 0
      %s28 = sshll.u32 %s1, 4
      %s29 = int_to_ptr.hbm [resolvable:$true] %s28
      %s30 = sshll.u32 [#allocation5], 4
      %s31 = int_to_ptr.vmem [resolvable:$true] %s30
      %36 = dma.hbm_to_vmem [thread:$0]  %s29, 512, %s31, [#allocation6], 128, 128, 8
    $region9: #{tpu_custom_call.1} parent=1 // pred_fallthru
      _
    // Predicated region
    $region10: #{tpu_custom_call.1} parent=1 // pred_check
      _
    $region11: #{tpu_custom_call.1} parent=1 // pred_check_branch
      %38 = sbr.rel (0) target = $region13
    $region12: #{tpu_custom_call.1} parent=1 // pred_region
      _
    $region13: #{tpu_custom_call.1} parent=1 // pred_fallthru
      _
    // Predicated region
    $region14: #{tpu_custom_call.1} parent=1 // pred_check
      _
    $region15: #{tpu_custom_call.1} parent=1 // pred_check_branch
      %40 = sbr.rel (0) target = $region17
    $region16: #{tpu_custom_call.1} parent=1 // pred_region
      %42 = vsyncadd [#allocation6], 0
      %s43 = sshll.u32 %s3, 4
      %s44 = int_to_ptr.hbm [resolvable:$true] %s43
      %s45 = sshll.u32 [#allocation7], 4
      %s46 = int_to_ptr.vmem [resolvable:$true] %s45
      %51 = dma.hbm_to_vmem [thread:$0]  %s44, 512, %s46, [#allocation6], 128, 128, 8
    $region17: #{tpu_custom_call.1} parent=1 // pred_fallthru
      _
    // Predicated region
    $region18: #{tpu_custom_call.1} parent=1 // pred_check
      _
    $region19: #{tpu_custom_call.1} parent=1 // pred_check_branch
      %53 = sbr.rel (0) target = $region21
    $region20: #{tpu_custom_call.1} parent=1 // pred_region
      _
    $region21: #{tpu_custom_call.1} parent=1 // pred_fallthru
      _
    // Predicated region
    $region22: #{tpu_custom_call.1} parent=1 // pred_check
      _
    $region23: #{tpu_custom_call.1} parent=1 // pred_check_branch
      %55 = sbr.rel (0) target = $region25
    $region24: #{tpu_custom_call.1} parent=1 // pred_region
      %57 = dma.done [#allocation3], 128
    $region25: #{tpu_custom_call.1} parent=1 // pred_fallthru
      _
    // Predicated region
    $region26: #{tpu_custom_call.1} parent=1 // pred_check
      _
    $region27: #{tpu_custom_call.1} parent=1 // pred_check_branch
      %59 = sbr.rel (0) target = $region29
    $region28: #{tpu_custom_call.1} parent=1 // pred_region
      %61 = dma.done [#allocation6], 512
    $region29: #{tpu_custom_call.1} parent=1 // pred_fallthru
      _
    // Predicated region
    $region30: #{tpu_custom_call.1} parent=1 // pred_check
      _
    $region31: #{tpu_custom_call.1} parent=1 // pred_check_branch
      %63 = sbr.rel (0) target = $region33
    $region32: #{tpu_custom_call.1} parent=1 // pred_region
      %65 = dma.done [#allocation6], 512
    $region33: #{tpu_custom_call.1} parent=1 // pred_fallthru
      _
    %v66 = vld [vmem:[#allocation2] sm:$0xff]
    %v67 = vld [vmem:[#allocation5] sm:$0xff]
    %v68 = vld [vmem:[#allocation5 + $0x8] sm:$0xff]
    %v69 = vld [vmem:[#allocation5 + $0x10] sm:$0xff]
    %v70 = vld [vmem:[#allocation5 + $0x18] sm:$0xff]
    %v71 = vld [vmem:[%s2] sm:$0x1]
    %v73 = vperm.slane %v71, 0
    %vm75 = vcmask 261120
    %v77 = vsel %vm75, %v66, 0
    %79 = vmatpush.msra.mxu0 0.0
    %80 = vmatpush.msra.mxu0 0.0
    %81 = vmatpush.msra.mxu0 0.0
    %82 = vmatpush.msra.mxu0 0.0
    %83 = vmatpush.msra.mxu0 0.0
    %84 = vmatpush.msra.mxu0 0.0
    %85 = vmatpush.msra.mxu0 0.0
    %86 = vmatpush.msra.mxu0 0.0
    %87 = vmatpush.msra.mxu0 0.0
    %88 = vmatpush.msra.mxu0 0.0
    %89 = vmatpush.msra.mxu0 0.0
    %90 = vmatpush.msra.mxu0 0.0
    %91 = vmatpush.msra.mxu0 %v70
    %92 = vmatpush.msra.mxu0 %v69
    %93 = vmatpush.msra.mxu0 %v68
    %94 = vmatpush.msra.mxu0 %v67
    %95 = vmatmul.f32.gmra.mxu0 %v77
    %v96 = vpop.f32.mrf.mxu0
    %v97 = vadd.f32 %v73, %v96
    %98 = vdwg.mxu0
    %v99 = vtanh.pop %v97
    %v100 = vld [vmem:[#allocation7] sm:$0xff]
    %v101 = vld [vmem:[#allocation7 + $0x8] sm:$0xff]
    %v102 = vld [vmem:[#allocation7 + $0x10] sm:$0xff]
    %v103 = vld [vmem:[#allocation7 + $0x18] sm:$0xff]
    %v104 = vld [vmem:[%s4] sm:$0x1]
    %v106 = vperm.slane %v104, 0
    %v109 = vsel %vm75, %v99, 0
    %111 = vmatpush.msra.mxu0 0.0
    %112 = vmatpush.msra.mxu0 0.0
    %113 = vmatpush.msra.mxu0 0.0
    %114 = vmatpush.msra.mxu0 0.0
    %115 = vmatpush.msra.mxu0 0.0
    %116 = vmatpush.msra.mxu0 0.0
    %117 = vmatpush.msra.mxu0 0.0
    %118 = vmatpush.msra.mxu0 0.0
    %119 = vmatpush.msra.mxu0 0.0
    %120 = vmatpush.msra.mxu0 0.0
    %121 = vmatpush.msra.mxu0 0.0
    %122 = vmatpush.msra.mxu0 0.0
    %123 = vmatpush.msra.mxu0 %v103
    %124 = vmatpush.msra.mxu0 %v102
    %125 = vmatpush.msra.mxu0 %v101
    %126 = vmatpush.msra.mxu0 %v100
    %127 = vmatmul.f32.gmra.mxu0 %v109
    %v128 = vpop.f32.mrf.mxu0
    %v129 = vadd.f32 %v106, %v128
    %130 = vdwg.mxu0
    %131 = vst [vmem:[#allocation8] sm:$0xff] %v129
    // Predicated region
    $region34: #{tpu_custom_call.1} parent=1 // pred_check
      _
    $region35: #{tpu_custom_call.1} parent=1 // pred_check_branch
      %133 = sbr.rel (0) target = $region37
    $region36: #{tpu_custom_call.1} parent=1 // pred_region
      %135 = vsyncadd [#allocation4], 0
      %s137 = sshll.u32 [#allocation8], 4
      %s138 = int_to_ptr.vmem [resolvable:$true] %s137
      %s139 = sshll.u32 %s5, 4
      %s140 = int_to_ptr.hbm [resolvable:$true] %s139
      %142 = dma.vmem_to_hbm [thread:$0]  %s138, 128, %s140, [#allocation4]
    $region37: #{tpu_custom_call.1} parent=1 // pred_fallthru
      _
    // Predicated region
    $region38: #{tpu_custom_call.1} parent=1 // pred_check
      _
    $region39: #{tpu_custom_call.1} parent=1 // pred_check_branch
      %144 = sbr.rel (0) target = $region41
    $region40: #{tpu_custom_call.1} parent=1 // pred_region
      %146 = dma.done [#allocation4], 128
    $region41: #{tpu_custom_call.1} parent=1 // pred_fallthru
      _
    %147 = vsyncpa [#allocation3], 1
    %148 = vsyncpa [#allocation6], 1
    %149 = vsyncpa [#allocation4], 1

</llo_original>
